<compile_context>
chip_gen: v7x
topology: tpu7x:2x2x1
jax: 0.10.0
libtpu: 0.0.40
codegen_flags: <defaults>
</compile_context>

<pallas_src>
import functools

import jax
import jax.numpy as jnp
from jax import lax
from jax.experimental import pallas as pl
from jax.experimental.pallas import tpu as pltpu


_NEG_BIG = -1e30                       # bias value for padded vocab columns
_VMEM_LIMIT = 64 * 1024 * 1024


def _round_up(x, m):
    return (x + m - 1) // m * m


def _tm_cap():
    # v5e MXU is 128x128 -> 128-row tiles; v6e/v7x MXU is 2x256^2 -> 256-row tiles.
    try:
        kind = jax.devices()[0].device_kind.lower()
    except Exception:
        return 256
    if "v5 lite" in kind or "v5e" in kind or "v5litepod" in kind:
        return 128
    return 256


def _row_tiling(num_rows):
    # Keep padding minimal (round to 8) when R is small; full MXU-height tiles when big.
    r8 = _round_up(num_rows, 8)
    tm = min(_tm_cap(), r8)
    r_pad = _round_up(num_rows, tm)
    return tm, r_pad


def _col_tiling(vocab, cap=512):
    v_pad = _round_up(vocab, 128)
    tn = min(cap, v_pad)
    while v_pad % tn:
        tn -= 128
    return tn, v_pad


def _pad_rows(x, r_pad):
    r = x.shape[0]
    return x if r_pad == r else jnp.pad(x, ((0, r_pad - r), (0, 0)))


def _pad_head(w, b, v_pad):
    v = w.shape[1]
    if v_pad == v:
        return w, b
    w = jnp.pad(w, ((0, 0), (0, v_pad - v)))
    b = jnp.pad(b, ((0, 0), (0, v_pad - v)), constant_values=_NEG_BIG)
    return w, b


# ------------- stateless counter-based Gumbel noise (kernel + reference) -------------

def _gumbel_noise(rows_i32, cols_i32, sample_idx, seed, rows_total, vocab):
    """Gumbel(0,1) noise from a counter hash (lowbias32-style mixing).

    Pure jnp (VPU integer ops + EUP logs): identical inside Mosaic kernels, under TPU
    interpret mode, and in plain JAX, so the demo can check the kernels against a
    pure-JAX reference (up to bf16 matmul rounding)."""
    ctr = ((sample_idx * rows_total + rows_i32) * vocab + cols_i32).astype(jnp.uint32)
    key = (jnp.asarray(seed, jnp.uint32) * jnp.uint32(0x85EBCA6B)) | jnp.uint32(1)
    x = ctr * jnp.uint32(0x9E3779B9) + key
    x = x ^ (x >> 16)
    x = x * jnp.uint32(0x21F0AAAD)
    x = x ^ (x >> 15)
    x = x * jnp.uint32(0x735A2D97)
    x = x ^ (x >> 15)
    u24 = (x >> 8).astype(jnp.int32)                                  # 24 random bits
    u = (u24.astype(jnp.float32) + 0.5) * jnp.float32(1.0 / (1 << 24))  # (0, 1) open
    return -jnp.log(-jnp.log(u))


# ------------------------------ fused Pallas kernels ---------------------------------

def _argmax_kernel(seed_ref, x_ref, w_ref, b_ref, o_ref, m_sc, idx_sc, *,
                   tm, tn, add_noise, rows_total, vocab, sub):
    """argmax over (logits [+ gumbel noise]) with a vocab-tiled online reduction.

    grid = (row_tiles, n_img, vocab_tiles); outputs int32 indices (minus `sub`).
    Covers both the online=False path and the online=True, gumbel_hard=True path
    (argmax((l+g)/tau) == argmax(l+g): temperature & softmax are skipped)."""
    i = pl.program_id(0)          # row tile
    s = pl.program_id(1)          # image-sample index (size 1 for the offline path)
    k = pl.program_id(2)          # vocab tile (online reduction axis)

    @pl.when(k == 0)
    def _():
        m_sc[...] = jnp.full(m_sc.shape, -jnp.inf, jnp.float32)
        idx_sc[...] = jnp.zeros(idx_sc.shape, jnp.int32)

    # bf16 operands on the MXU, f32 accumulate; bias added in f32.
    y = jnp.dot(x_ref[...], w_ref[...], preferred_element_type=jnp.float32) + b_ref[...]
    cols = k * tn + lax.broadcasted_iota(jnp.int32, y.shape, 1)
    if add_noise:
        rows = i * tm + lax.broadcasted_iota(jnp.int32, y.shape, 0)
        y = y + _gumbel_noise(rows, cols, s, seed_ref[0], rows_total, vocab)

    tile_max = jnp.max(y, axis=-1, keepdims=True)
    # First-argmax within the tile (torch tie rule); manual max/where/min trick is
    # kept because a native argmax reduce does not reliably lower in Mosaic.
    cand = jnp.where(y >= tile_max, cols, jnp.int32(2**31 - 1))
    tile_idx = jnp.min(cand, axis=-1, keepdims=True)
    better = tile_max > m_sc[...]            # strict '>' keeps the earliest tile on ties
    idx_sc[...] = jnp.where(better, tile_idx, idx_sc[...])
    m_sc[...] = jnp.maximum(m_sc[...], tile_max)

    @pl.when(k == pl.num_programs(2) - 1)
    def _():
        # Finalize-only (tm, 1) store, once per (sample, row-tile): a lane-dense
        # index layout was considered but the writeback here is already negligible.
        o_ref[...] = idx_sc[...] - sub


def _soft_gumbel_kernel(seed_ref, x_ref, w_ref, b_ref, o_ref, *,
                        tm, temp, rows_total, vocab):
    """Soft gumbel_softmax over the image vocab; grid = (row_tiles, n_img)."""
    i = pl.program_id(0)
    s = pl.program_id(1)
    logits = jnp.dot(x_ref[...], w_ref[...],
                     preferred_element_type=jnp.float32) + b_ref[...]
    rows = i * tm + lax.broadcasted_iota(jnp.int32, logits.shape, 0)
    cols = lax.broadcasted_iota(jnp.int32, logits.shape, 1)
    g = _gumbel_noise(rows, cols, s, seed_ref[0], rows_total, vocab)
    y = (logits + g) * (1.0 / temp)
    m = jnp.max(y, axis=-1, keepdims=True)
    e = jnp.exp(y - m)
    denom = jnp.sum(e, axis=-1, keepdims=True)
    o_ref[...] = (e * pl.reciprocal(denom, approx=True)).astype(o_ref.dtype)


# ------------------------------ pallas_call wrappers ---------------------------------

def fused_argmax_sample(x_flat, w, b, *, seed=0, add_noise=False, n_img=1,
                        sub=0, tn_cap=512):
    """Fused head matmul + (gumbel-)argmax; returns int32 indices [n_img, R]."""
    R, D = x_flat.shape
    V = w.shape[1]
    tm, r_pad = _row_tiling(R)
    tn, v_pad = _col_tiling(V, tn_cap)
    x_p = _pad_rows(x_flat, r_pad).astype(jnp.bfloat16)
    w_p, b_p = _pad_head(w, b, v_pad)
    w_p = w_p.astype(jnp.bfloat16)
    b_p = b_p.astype(jnp.float32)

    kernel = functools.partial(_argmax_kernel, tm=tm, tn=tn, add_noise=bool(add_noise),
                               rows_total=R, vocab=V, sub=int(sub))
    out = pl.pallas_call(
        kernel,
        out_shape=jax.ShapeDtypeStruct((n_img, r_pad, 1), jnp.int32),
        grid_spec=pltpu.PrefetchScalarGridSpec(
            num_scalar_prefetch=1,
            grid=(r_pad // tm, n_img, v_pad // tn),
            in_specs=[pl.BlockSpec((tm, D), lambda i, s, k, sd: (i, 0)),
                      pl.BlockSpec((D, tn), lambda i, s, k, sd: (0, k)),
                      pl.BlockSpec((1, tn), lambda i, s, k, sd: (0, k))],
            out_specs=pl.BlockSpec((None, tm, 1), lambda i, s, k, sd: (s, i, 0)),
            scratch_shapes=[pltpu.VMEM((tm, 1), jnp.float32),
                            pltpu.VMEM((tm, 1), jnp.int32)]),
        compiler_params=pltpu.CompilerParams(
            dimension_semantics=("parallel", "parallel", "arbitrary"),
            vmem_limit_bytes=_VMEM_LIMIT),
    )(jnp.asarray([seed], dtype=jnp.int32), x_p, w_p, b_p)
    return out[:, :R, 0]                                              # [n_img, R]


def fused_gumbel_softmax(x_flat, w_img, b_img, *, seed, temp, n_img):
    """Fused head matmul + soft gumbel_softmax; returns bf16 probs [n_img, R, Vi]."""
    R, D = x_flat.shape
    Vi = w_img.shape[1]
    tm, r_pad = _row_tiling(R)
    v_pad = _round_up(Vi, 128)
    x_p = _pad_rows(x_flat, r_pad).astype(jnp.bfloat16)
    w_p, b_p = _pad_head(w_img, b_img, v_pad)
    w_p = w_p.astype(jnp.bfloat16)
    b_p = b_p.astype(jnp.float32)

    kernel = functools.partial(_soft_gumbel_kernel, tm=tm, temp=float(temp),
                               rows_total=R, vocab=Vi)
    out = pl.pallas_call(
        kernel,
        out_shape=jax.ShapeDtypeStruct((n_img, r_pad, v_pad), jnp.bfloat16),
        grid_spec=pltpu.PrefetchScalarGridSpec(
            num_scalar_prefetch=1,
            grid=(r_pad // tm, n_img),
            in_specs=[pl.BlockSpec((tm, D), lambda i, s, sd: (i, 0)),
                      pl.BlockSpec((D, v_pad), lambda i, s, sd: (0, 0)),   # resident head
                      pl.BlockSpec((1, v_pad), lambda i, s, sd: (0, 0))],
            out_specs=pl.BlockSpec((None, tm, v_pad), lambda i, s, sd: (s, i, 0))),
        compiler_params=pltpu.CompilerParams(
            dimension_semantics=("parallel", "parallel"),
            vmem_limit_bytes=_VMEM_LIMIT),
    )(jnp.asarray([seed], dtype=jnp.int32), x_p, w_p, b_p)
    if r_pad != R:
        out = out[:, :R, :]
    if v_pad != Vi:
        out = out[:, :, :Vi]
    return out                                                        # [n_img, R, Vi] bf16


# ------------------------------ synthetic wrapped model ------------------------------

class SyntheticDALLE:
    """Minimal deterministic stand-in for the wrapped DALL-E:
    embed(text || image) -> linear head -> logits over text+image vocab."""

    def __init__(self, key, num_text_tokens=128, num_image_tokens=256, dim=32):
        self.num_text_tokens = num_text_tokens
        self.num_image_tokens = num_image_tokens
        self.total_tokens = num_text_tokens + num_image_tokens
        self.dim = dim
        k1, k2, k3, k4 = jax.random.split(key, 4)
        s = 0.02
        self.text_emb = jax.random.normal(k1, (num_text_tokens, dim), jnp.float32) * s
        self.img_emb = jax.random.normal(k2, (num_image_tokens, dim), jnp.float32) * s
        self.w_out = jax.random.normal(k3, (dim, self.total_tokens), jnp.float32) * s
        self.b_out = jax.random.normal(k4, (1, self.total_tokens), jnp.float32) * s

    def embed_flat(self, text, image):
        B = text.shape[0]
        x = jnp.concatenate([jnp.take(self.text_emb, text, axis=0),
                             jnp.take(self.img_emb, image, axis=0)], axis=1)   # [B, S, D]
        S = x.shape[1]
        return x.reshape(B * S, self.dim), B, S


# ------------------------------ DALLEHalluc (Pallas) ---------------------------------

class DALLEHallucPallas:
    def __init__(self, model, src_dict, online, gumbel_hard, temp, temp_decay, n_img):
        self.model = model
        self.src_dict = src_dict
        self.online = online
        self.gumbel_hard = gumbel_hard
        self.init_temp = temp
        self.temp = temp
        self.temp_decay = temp_decay
        self.n_img = n_img

    def set_num_updates(self, num_updates):
        if self.temp_decay > 0:
            self.temp = self.init_temp * (1 - self.temp_decay) ** num_updates
        return self.temp

    def forward(self, src_tokens, img_tokens=None, seed=0):
        if img_tokens is None:
            # TODO(synk): model.generate_images is the wrapped DALL-E's autoregressive
            # sampling loop; no clean single-kernel equivalent.
            raise NotImplementedError("generate_images path not implemented")
        # model.eval() / torch.set_grad_enabled(): no-op in this JAX inference port.
        x_flat, B, S = self.model.embed_flat(src_tokens, img_tokens)
        # TODO(synk): return_loss cross-entropy is internal to the opaque wrapped DALL-E;
        # None matches return_loss=False behaviour.
        loss = None
        T = self.model.num_text_tokens
        n = max(int(self.n_img), 1)
        if self.online:
            Vi = self.model.num_image_tokens
            # Image-vocab slice taken on the tiny [D, V] head, never on logits.
            w_img = self.model.w_out[:, T:]
            b_img = self.model.b_out[:, T:]
            if self.gumbel_hard:
                idx = fused_argmax_sample(x_flat, w_img, b_img, seed=seed,
                                          add_noise=True, n_img=n, sub=0)      # [n, R]
                # One-hot built OUTSIDE the kernel (keeps gumbel_softmax(hard=True)
                # output semantics; downstream should consume the indices directly).
                out = jax.nn.one_hot(idx, Vi, dtype=jnp.float32).reshape(n, B, S, Vi)
            else:
                out = fused_gumbel_softmax(x_flat, w_img, b_img, seed=seed,
                                           temp=self.temp, n_img=n)            # bf16
                out = out.reshape(n, B, S, Vi)
            img_seq = [out[i] for i in range(n)] if self.n_img > 1 else out[0]
        else:
            idx = fused_argmax_sample(x_flat, self.model.w_out, self.model.b_out,
                                      add_noise=False, n_img=1, sub=T)         # [1, R]
            ids = idx[0].reshape(B, S)
            img_seq = [ids for _ in range(n)] if self.n_img > 1 else ids
        return img_seq, loss


# --------------------------------------- demo ----------------------------------------

if __name__ == "__main__":
    key = jax.random.PRNGKey(0)
    kmodel, ktext, kimg = jax.random.split(key, 3)

    B, text_len, img_len = 2, 8, 8
    model = SyntheticDALLE(kmodel, num_text_tokens=128, num_image_tokens=256, dim=32)
    src_tokens = jax.random.randint(ktext, (B, text_len), 0, model.num_text_tokens,
                                    dtype=jnp.int32)
    img_tokens = jax.random.randint(kimg, (B, img_len), 0, model.num_image_tokens,
                                    dtype=jnp.int32)

    S = text_len + img_len
    R = B * S
    T = model.num_text_tokens
    Vi = model.num_image_tokens

    # Pure-JAX (unfused, f32) reference logits for correctness checks.
    x_flat, _, _ = model.embed_flat(src_tokens, img_tokens)
    ref_logits = x_flat @ model.w_out + model.b_out                     # [R, V]
    row = jnp.arange(R)

    # online=True, gumbel_hard=True -> fused matmul + gumbel-argmax (index) kernel.
    halluc_online = DALLEHallucPallas(model, src_dict=None, online=True, gumbel_hard=True,
                                      temp=1.0, temp_decay=0.0, n_img=1)
    img_seq, loss = halluc_online.forward(src_tokens, img_tokens, seed=0)
    img_seq = jax.block_until_ready(img_seq)
    assert img_seq.shape == (B, S, Vi)
    flat = img_seq.reshape(R, Vi)
    assert bool(jnp.all(jnp.abs(flat.sum(-1) - 1.0) < 1e-6))            # hard one-hot rows
    # Same stateless noise outside the kernel -> same argmax (tolerant to bf16 rounding).
    g = _gumbel_noise(jnp.arange(R, dtype=jnp.int32)[:, None],
                      jnp.arange(Vi, dtype=jnp.int32)[None, :], 0, 0, R, Vi)
    y_ref = ref_logits[:, T:] + g
    ker_idx = jnp.argmax(flat, axis=-1)
    ref_idx = jnp.argmax(y_ref, axis=-1)
    gap = jnp.abs(y_ref[row, ref_idx] - y_ref[row, ker_idx])
    assert bool(jnp.all((ker_idx == ref_idx) | (gap < 1e-3)))

    # online=True, gumbel_hard=False -> fused matmul + soft gumbel_softmax (bf16 probs).
    halluc_soft = DALLEHallucPallas(model, src_dict=None, online=True, gumbel_hard=False,
                                    temp=0.7, temp_decay=0.0, n_img=2)
    soft_seqs, _ = halluc_soft.forward(src_tokens, img_tokens, seed=3)
    soft_seqs = jax.block_until_ready(soft_seqs)
    assert isinstance(soft_seqs, list) and len(soft_seqs) == 2
    assert soft_seqs[0].shape == (B, S, Vi) and soft_seqs[0].dtype == jnp.bfloat16
    sums = soft_seqs[0].astype(jnp.float32).sum(-1)
    assert bool(jnp.all(jnp.abs(sums - 1.0) < 2e-2))                    # bf16 + approx recip

    # online=False -> fused matmul + (argmax(-1) - num_text_tokens) kernel.
    halluc_offline = DALLEHallucPallas(model, src_dict=None, online=False, gumbel_hard=False,
                                       temp=1.0, temp_decay=0.0, n_img=1)
    ids, _ = halluc_offline.forward(src_tokens, img_tokens)
    ids = jax.block_until_ready(ids)
    assert ids.shape == (B, S)
    ids_full = ids.reshape(-1) + T
    ref_full = jnp.argmax(ref_logits, axis=-1)
    gap2 = jnp.abs(ref_logits[row, ref_full] - ref_logits[row, ids_full])
    assert bool(jnp.all((ids_full == ref_full) | (gap2 < 1e-3)))

    # Exercise the cross-vocab-tile online argmax reduction (V=384 split into 3 tiles).
    ids_tiled = fused_argmax_sample(x_flat, model.w_out, model.b_out,
                                    add_noise=False, n_img=1, sub=T, tn_cap=128)[0] + T
    ids_tiled = jax.block_until_ready(ids_tiled)
    gap3 = jnp.abs(ref_logits[row, ref_full] - ref_logits[row, ids_tiled])
    assert bool(jnp.all((ids_tiled == ref_full) | (gap3 < 1e-3)))

    print("KERNEL_OK")
</pallas_src>

<mosaic_0001>
module attributes {stable_mosaic.version = 11 : i64} {
  func.func @_argmax_kernel(%arg0: i32, %arg1: i32, %arg2: i32, %arg3: memref<1xi32, #tpu.memory_space<smem>>, %arg4: memref<32x32xbf16, #tpu.memory_space<vmem>>, %arg5: memref<32x256xbf16, #tpu.memory_space<vmem>>, %arg6: memref<1x256xf32, #tpu.memory_space<vmem>>, %arg7: memref<1x32x1xi32, #tpu.memory_space<vmem>>, %arg8: memref<32x1xf32, #tpu.memory_space<vmem>>, %arg9: memref<32x1xi32, #tpu.memory_space<vmem>>) attributes {dimension_semantics = [#tpu.dimension_semantics<parallel>, #tpu.dimension_semantics<parallel>, #tpu.dimension_semantics<arbitrary>], iteration_bounds = array<i64: 1, 1, 1>, scalar_prefetch = 1 : i64, scratch_operands = 2 : i64, tpu.core_type = #tpu.core_type<tc>, window_params = [{transform_indices = @transform_0, window_bounds = array<i64: 32, 32>}, {transform_indices = @transform_1, window_bounds = array<i64: 32, 256>}, {transform_indices = @transform_2, window_bounds = array<i64: 1, 256>}, {transform_indices = @transform_3, window_bounds = array<i64: 1, 32, 1>}]} {
    %c0_i32 = arith.constant 0 : i32
    %0 = arith.cmpi eq, %arg2, %c0_i32 : i32
    %1 = arith.extui %0 : i1 to i32
    %c0_i32_0 = arith.constant 0 : i32
    %2 = arith.cmpi ne, %1, %c0_i32_0 : i32
    scf.if %2 {
      %cst_28 = arith.constant 0xFF800000 : f32
      %76 = vector.broadcast %cst_28 : f32 to vector<32x1xf32>
      %c0_29 = arith.constant 0 : index
      %c0_30 = arith.constant 0 : index
      %77 = vector.load %arg8[%c0_29, %c0_30] : memref<32x1xf32, #tpu.memory_space<vmem>>, vector<32x1xf32>
      tpu.vector_store %arg8[%c0_29, %c0_30], %76 {strides = array<i32>} : memref<32x1xf32, #tpu.memory_space<vmem>>, vector<32x1xf32>,
      %c0_i32_31 = arith.constant 0 : i32
      %78 = vector.broadcast %c0_i32_31 : i32 to vector<32x1xi32>
      %c0_32 = arith.constant 0 : index
      %c0_33 = arith.constant 0 : index
      %79 = vector.load %arg9[%c0_32, %c0_33] : memref<32x1xi32, #tpu.memory_space<vmem>>, vector<32x1xi32>
      tpu.vector_store %arg9[%c0_32, %c0_33], %78 {strides = array<i32>} : memref<32x1xi32, #tpu.memory_space<vmem>>, vector<32x1xi32>,
    } else {
    }
    %c0 = arith.constant 0 : index
    %c0_1 = arith.constant 0 : index
    %3 = vector.load %arg4[%c0, %c0_1] : memref<32x32xbf16, #tpu.memory_space<vmem>>, vector<32x32xbf16>
    %c0_2 = arith.constant 0 : index
    %c0_3 = arith.constant 0 : index
    %4 = vector.load %arg5[%c0_2, %c0_3] : memref<32x256xbf16, #tpu.memory_space<vmem>>, vector<32x256xbf16>
    %cst = arith.constant dense<0.000000e+00> : vector<32x256xf32>
    %5 = tpu.matmul %3, %4, %cst {dimension_numbers = #tpu.dot_dimension_numbers<[1], [0], [0], [1], [0, 0, 1, 1], [], []>} : vector<32x32xbf16>, vector<32x256xbf16>, vector<32x256xf32> -> vector<32x256xf32>
    %c0_4 = arith.constant 0 : index
    %c0_5 = arith.constant 0 : index
    %6 = vector.load %arg6[%c0_4, %c0_5] : memref<1x256xf32, #tpu.memory_space<vmem>>, vector<1x256xf32>
    %7 = vector.broadcast %6 : vector<1x256xf32> to vector<32x256xf32>
    %8 = arith.addf %5, %7 : vector<32x256xf32>
    %c256_i32 = arith.constant 256 : i32
    %9 = arith.muli %arg2, %c256_i32 : i32
    %10 = tpu.iota {dimensions = array<i32: 1>} : vector<32x256xi32>
    %11 = vector.broadcast %9 : i32 to vector<32x256xi32>
    %12 = arith.addi %11, %10 : vector<32x256xi32>
    %c32_i32 = arith.constant 32 : i32
    %13 = arith.muli %arg0, %c32_i32 : i32
    %14 = tpu.iota {dimensions = array<i32: 0>} : vector<32x256xi32>
    %15 = vector.broadcast %13 : i32 to vector<32x256xi32>
    %16 = arith.addi %15, %14 : vector<32x256xi32>
    %c0_6 = arith.constant 0 : index
    %17 = memref.load %arg3[%c0_6] : memref<1xi32, #tpu.memory_space<smem>>
    %c32_i32_7 = arith.constant 32 : i32
    %18 = arith.muli %arg1, %c32_i32_7 : i32
    %19 = vector.broadcast %18 : i32 to vector<32x256xi32>
    %20 = arith.addi %19, %16 : vector<32x256xi32>
    %c256_i32_8 = arith.constant 256 : i32
    %21 = vector.broadcast %c256_i32_8 : i32 to vector<32x256xi32>
    %22 = arith.muli %20, %21 : vector<32x256xi32>
    %23 = arith.addi %22, %12 : vector<32x256xi32>
    %c-2048144789_i32 = arith.constant -2048144789 : i32
    %24 = arith.muli %17, %c-2048144789_i32 : i32
    %c1_i32 = arith.constant 1 : i32
    %25 = arith.ori %24, %c1_i32 : i32
    %c-1640531527_i32 = arith.constant -1640531527 : i32
    %26 = vector.broadcast %c-1640531527_i32 : i32 to vector<32x256xi32>
    %27 = arith.muli %23, %26 : vector<32x256xi32>
    %28 = vector.broadcast %25 : i32 to vector<32x256xi32>
    %29 = arith.addi %27, %28 : vector<32x256xi32>
    %c16_i32 = arith.constant 16 : i32
    %30 = vector.broadcast %c16_i32 : i32 to vector<32x256xi32>
    %31 = arith.shrui %29, %30 : vector<32x256xi32>
    %32 = arith.xori %29, %31 : vector<32x256xi32>
    %c569420461_i32 = arith.constant 569420461 : i32
    %33 = vector.broadcast %c569420461_i32 : i32 to vector<32x256xi32>
    %34 = arith.muli %32, %33 : vector<32x256xi32>
    %c15_i32 = arith.constant 15 : i32
    %35 = vector.broadcast %c15_i32 : i32 to vector<32x256xi32>
    %36 = arith.shrui %34, %35 : vector<32x256xi32>
    %37 = arith.xori %34, %36 : vector<32x256xi32>
    %c1935289751_i32 = arith.constant 1935289751 : i32
    %38 = vector.broadcast %c1935289751_i32 : i32 to vector<32x256xi32>
    %39 = arith.muli %37, %38 : vector<32x256xi32>
    %c15_i32_9 = arith.constant 15 : i32
    %40 = vector.broadcast %c15_i32_9 : i32 to vector<32x256xi32>
    %41 = arith.shrui %39, %40 : vector<32x256xi32>
    %42 = arith.xori %39, %41 : vector<32x256xi32>
    %c8_i32 = arith.constant 8 : i32
    %43 = vector.broadcast %c8_i32 : i32 to vector<32x256xi32>
    %44 = arith.shrui %42, %43 : vector<32x256xi32>
    %45 = arith.sitofp %44 : vector<32x256xi32> to vector<32x256xf32>
    %cst_10 = arith.constant 5.000000e-01 : f32
    %46 = vector.broadcast %cst_10 : f32 to vector<32x256xf32>
    %47 = arith.addf %45, %46 : vector<32x256xf32>
    %cst_11 = arith.constant 5.96046448E-8 : f32
    %48 = vector.broadcast %cst_11 : f32 to vector<32x256xf32>
    %49 = arith.mulf %47, %48 : vector<32x256xf32>
    %50 = math.log %49 : vector<32x256xf32>
    %cst_12 = arith.constant 0.000000e+00 : f32
    %51 = vector.broadcast %cst_12 : f32 to vector<32x256xf32>
    %52 = arith.subf %51, %50 : vector<32x256xf32>
    %53 = math.log %52 : vector<32x256xf32>
    %cst_13 = arith.constant 0.000000e+00 : f32
    %54 = vector.broadcast %cst_13 : f32 to vector<32x256xf32>
    %55 = arith.subf %54, %53 : vector<32x256xf32>
    %56 = arith.addf %8, %55 : vector<32x256xf32>
    %cst_14 = arith.constant dense<0xFF800000> : vector<32xf32>
    %57 = vector.multi_reduction <maximumf>, %56, %cst_14 [1] : vector<32x256xf32> to vector<32xf32>
    %58 = vector.shape_cast %57 : vector<32xf32> to vector<32x1xf32>
    %59 = vector.broadcast %58 : vector<32x1xf32> to vector<32x256xf32>
    %60 = arith.cmpf oge, %56, %59 : vector<32x256xf32>
    %c2147483647_i32 = arith.constant 2147483647 : i32
    %61 = vector.broadcast %c2147483647_i32 : i32 to vector<32x256xi32>
    %62 = arith.select %60, %12, %61 : vector<32x256xi1>, vector<32x256xi32>
    %cst_15 = arith.constant dense<2147483647> : vector<32xi32>
    %63 = vector.multi_reduction <minsi>, %62, %cst_15 [1] : vector<32x256xi32> to vector<32xi32>
    %64 = vector.shape_cast %63 : vector<32xi32> to vector<32x1xi32>
    %c0_16 = arith.constant 0 : index
    %c0_17 = arith.constant 0 : index
    %65 = vector.load %arg8[%c0_16, %c0_17] : memref<32x1xf32, #tpu.memory_space<vmem>>, vector<32x1xf32>
    %66 = arith.cmpf ogt, %58, %65 : vector<32x1xf32>
    %c0_18 = arith.constant 0 : index
    %c0_19 = arith.constant 0 : index
    %67 = vector.load %arg9[%c0_18, %c0_19] : memref<32x1xi32, #tpu.memory_space<vmem>>, vector<32x1xi32>
    %68 = arith.select %66, %64, %67 : vector<32x1xi1>, vector<32x1xi32>
    %c0_20 = arith.constant 0 : index
    %c0_21 = arith.constant 0 : index
    %69 = vector.load %arg9[%c0_20, %c0_21] : memref<32x1xi32, #tpu.memory_space<vmem>>, vector<32x1xi32>
    tpu.vector_store %arg9[%c0_20, %c0_21], %68 {strides = array<i32>} : memref<32x1xi32, #tpu.memory_space<vmem>>, vector<32x1xi32>,
    %c0_22 = arith.constant 0 : index
    %c0_23 = arith.constant 0 : index
    %70 = vector.load %arg8[%c0_22, %c0_23] : memref<32x1xf32, #tpu.memory_space<vmem>>, vector<32x1xf32>
    %71 = arith.maximumf %70, %58 : vector<32x1xf32>
    %c0_24 = arith.constant 0 : index
    %c0_25 = arith.constant 0 : index
    %72 = vector.load %arg8[%c0_24, %c0_25] : memref<32x1xf32, #tpu.memory_space<vmem>>, vector<32x1xf32>
    tpu.vector_store %arg8[%c0_24, %c0_25], %71 {strides = array<i32>} : memref<32x1xf32, #tpu.memory_space<vmem>>, vector<32x1xf32>,
    %c0_i32_26 = arith.constant 0 : i32
    %73 = arith.cmpi eq, %arg2, %c0_i32_26 : i32
    %74 = arith.extui %73 : i1 to i32
    %c0_i32_27 = arith.constant 0 : i32
    %75 = arith.cmpi ne, %74, %c0_i32_27 : i32
    scf.if %75 {
      %c0_28 = arith.constant 0 : index
      %c0_29 = arith.constant 0 : index
      %76 = vector.load %arg9[%c0_28, %c0_29] : memref<32x1xi32, #tpu.memory_space<vmem>>, vector<32x1xi32>
      %c0_i32_30 = arith.constant 0 : i32
      %77 = vector.broadcast %c0_i32_30 : i32 to vector<32x1xi32>
      %78 = arith.subi %76, %77 : vector<32x1xi32>
      %c0_31 = arith.constant 0 : index
      %c0_32 = arith.constant 0 : index
      %c0_33 = arith.constant 0 : index
      %79 = vector.load %arg7[%c0_31, %c0_32, %c0_33] : memref<1x32x1xi32, #tpu.memory_space<vmem>>, vector<1x32x1xi32>
      %80 = vector.shape_cast %79 : vector<1x32x1xi32> to vector<32x1xi32>
      %81 = vector.shape_cast %78 : vector<32x1xi32> to vector<1x32x1xi32>
      tpu.vector_store %arg7[%c0_31, %c0_32, %c0_33], %81 {strides = array<i32>} : memref<1x32x1xi32, #tpu.memory_space<vmem>>, vector<1x32x1xi32>,
    } else {
    }
    return
  }
  func.func @transform_0(%arg0: i32, %arg1: i32, %arg2: i32, %arg3: memref<1xi32, #tpu.memory_space<smem>>) -> (i32, i32) {
    %c0_i32 = arith.constant 0 : i32
    %c0_i32_0 = arith.constant 0 : i32
    return %arg0, %c0_i32 : i32, i32
  }
  func.func @transform_1(%arg0: i32, %arg1: i32, %arg2: i32, %arg3: memref<1xi32, #tpu.memory_space<smem>>) -> (i32, i32) {
    %c0_i32 = arith.constant 0 : i32
    %c0_i32_0 = arith.constant 0 : i32
    return %c0_i32, %arg2 : i32, i32
  }
  func.func @transform_2(%arg0: i32, %arg1: i32, %arg2: i32, %arg3: memref<1xi32, #tpu.memory_space<smem>>) -> (i32, i32) {
    %c0_i32 = arith.constant 0 : i32
    %c0_i32_0 = arith.constant 0 : i32
    return %c0_i32, %arg2 : i32, i32
  }
  func.func @transform_3(%arg0: i32, %arg1: i32, %arg2: i32, %arg3: memref<1xi32, #tpu.memory_space<smem>>) -> (i32, i32, i32) {
    %c0_i32 = arith.constant 0 : i32
    %c0_i32_0 = arith.constant 0 : i32
    return %arg1, %arg0, %c0_i32 : i32, i32, i32
  }
}

</mosaic_0001>

<llo_original>
// kernel: tpu_custom_call.1
$region0: #{tpu_custom_call.1}
  #allocation0 [shape = 'u32[]', space=smem, size = 0x4, offset = 0x4, fixed_abs, tag = 'smem constant byte address 0x4 - core index']
  #allocation1 [shape = 'u32[144,128]{1,0:T(1,128)}', space=vmem, size = 0x12000, scoped, tag = 'internal scratch']
  #allocation2 [shape = 'f32[32,1]{1,0:T(8,128)}', space=vmem, size = 0x4000, scoped, tag = 'scratch operand']
  #allocation3 [shape = 's32[32,1]{1,0:T(8,128)}', space=vmem, size = 0x4000, scoped, tag = 'scratch operand']
  #allocation4 [shape = 's32[1]{0}', space=sflag, size = 0x4, scoped, tag = 'scoped memory for tpu_custom_call.1']
  #allocation5 [shape = 's32[1]{0:T(128)S(6)}', space=smem, size = 0x200, scoped, tag = 'prefetched SMEM operand 0']
  %s0 = inlined_call_operand.<no memory space> [shape: s32[1], index: 0, kind: input, shape index: {}]
  %s1 = inlined_call_operand.hbm [shape: bf16[32,32], index: 1, kind: input, shape index: {}]
  %s2 = inlined_call_operand.hbm [shape: bf16[32,256], index: 2, kind: input, shape index: {}]
  %s3 = inlined_call_operand.hbm [shape: f32[1,256], index: 3, kind: input, shape index: {}]
  %s4 = inlined_call_operand.hbm [shape: s32[1,32,1], index: 4, kind: output, shape index: {}]
  %s5 = sld [smem:[#allocation0]]
  $region42: #{tpu_custom_call.1} parent=0
    _
  %s7 = ssub.s32 1, %s5
  %s8 = scalar_select 0, %s7, %s5
  %9 = sst [smem:[#allocation5]] %s0
  $region1: #{tpu_custom_call.1} parent=0
    #allocation6 [shape = 'u8[8192]{0}', space=vmem, size = 0x2000, scoped, tag = 'input window, operand 1, single buffered']
    #allocation7 [shape = 's32[1]{0}', space=sflag, size = 0x4, scoped, tag = 'scoped memory for tpu_custom_call.1']
    #allocation8 [shape = 's32[1]{0}', space=sflag, size = 0x4, scoped, tag = 'scoped memory for tpu_custom_call.1']
    #allocation9 [shape = 'u8[16384]{0}', space=vmem, size = 0x4000, scoped, tag = 'input window, operand 2, single buffered']
    #allocation10 [shape = 's32[1]{0}', space=sflag, size = 0x4, scoped, tag = 'scoped memory for tpu_custom_call.1']
    #allocation11 [shape = 'u8[1024]{0}', space=vmem, size = 0x400, scoped, tag = 'input window, operand 3, single buffered']
    #allocation12 [shape = 'u8[16384]{0}', space=vmem, size = 0x4000, scoped, tag = 'output window, operand 0, single buffered']
    %10 = vsyncpa [#allocation7], 0
    %11 = vsyncpa [#allocation10], 0
    %12 = vsyncpa [#allocation8], 0
    // Predicated region
    $region2: #{tpu_custom_call.1} parent=1 // pred_check
      _
    $region3: #{tpu_custom_call.1} parent=1 // pred_check_branch
      %14 = sbr.rel (0) target = $region5
    $region4: #{tpu_custom_call.1} parent=1 // pred_region
      %s16 = ssub.s32 256, 256
      %17 = vsyncadd [#allocation7], %s16
      %s18 = sshll.u32 [#allocation6], 4
      %s19 = int_to_ptr.vmem [resolvable:$true] %s18
      %24 = dma.hbm_to_vmem [thread:$0]  %s1, 256, %s19, [#allocation7], 64, 64, 4
    $region5: #{tpu_custom_call.1} parent=1 // pred_fallthru
      _
    // Predicated region
    $region6: #{tpu_custom_call.1} parent=1 // pred_check
      _
    $region7: #{tpu_custom_call.1} parent=1 // pred_check_branch
      %26 = sbr.rel (0) target = $region9
    $region8: #{tpu_custom_call.1} parent=1 // pred_region
      %s28 = ssub.s32 512, 512
      %29 = vsyncadd [#allocation10], %s28
      %s30 = sshll.u32 [#allocation9], 4
      %s31 = int_to_ptr.vmem [resolvable:$true] %s30
      %36 = dma.hbm_to_vmem [thread:$0]  %s2, 512, %s31, [#allocation10], 128, 128, 8
    $region9: #{tpu_custom_call.1} parent=1 // pred_fallthru
      _
    // Predicated region
    $region10: #{tpu_custom_call.1} parent=1 // pred_check
      _
    $region11: #{tpu_custom_call.1} parent=1 // pred_check_branch
      %38 = sbr.rel (0) target = $region13
    $region12: #{tpu_custom_call.1} parent=1 // pred_region
      %s40 = ssub.s32 32, 32
      %41 = vsyncadd [#allocation10], %s40
      %s43 = sshll.u32 [#allocation11], 4
      %s44 = int_to_ptr.vmem [resolvable:$true] %s43
      %46 = dma.hbm_to_vmem [thread:$0]  %s3, 32, %s44, [#allocation10]
    $region13: #{tpu_custom_call.1} parent=1 // pred_fallthru
      _
    // Predicated region
    $region14: #{tpu_custom_call.1} parent=1 // pred_check
      _
    $region15: #{tpu_custom_call.1} parent=1 // pred_check_branch
      %48 = sbr.rel (0) target = $region17
    $region16: #{tpu_custom_call.1} parent=1 // pred_region
      %49 = dma.done [#allocation7], 256
    $region17: #{tpu_custom_call.1} parent=1 // pred_fallthru
      _
    // Predicated region
    $region18: #{tpu_custom_call.1} parent=1 // pred_check
      _
    $region19: #{tpu_custom_call.1} parent=1 // pred_check_branch
      %51 = sbr.rel (0) target = $region21
    $region20: #{tpu_custom_call.1} parent=1 // pred_region
      %52 = dma.done [#allocation10], 512
    $region21: #{tpu_custom_call.1} parent=1 // pred_fallthru
      _
    // Predicated region
    $region22: #{tpu_custom_call.1} parent=1 // pred_check
      _
    $region23: #{tpu_custom_call.1} parent=1 // pred_check_branch
      %54 = sbr.rel (0) target = $region25
    $region24: #{tpu_custom_call.1} parent=1 // pred_region
      %55 = dma.done [#allocation10], 32
    $region25: #{tpu_custom_call.1} parent=1 // pred_fallthru
      _
    %p57 = scmp.eq.s32.totalorder 0, 0
    // Predicated region
    $region26: #{tpu_custom_call.1} parent=1 // pred_check
      %p58 = pneg %p57
    $region27: #{tpu_custom_call.1} parent=1 // pred_check_branch
      %60 = sbr.rel (%p58) target = $region29
    $region28: #{tpu_custom_call.1} parent=1 // pred_region
      %vm61 = vcmask 7168
      %62 = vst.msk [vmem:[#allocation2] sm:$0xff] %vm61, -inf
      %63 = vst.msk [vmem:[#allocation2 + $0x8] sm:$0xff] %vm61, -inf
      %64 = vst.msk [vmem:[#allocation2 + $0x10] sm:$0xff] %vm61, -inf
      %65 = vst.msk [vmem:[#allocation2 + $0x18] sm:$0xff] %vm61, -inf
      %66 = vst.msk [vmem:[#allocation3] sm:$0xff] %vm61, 0
      %67 = vst.msk [vmem:[#allocation3 + $0x8] sm:$0xff] %vm61, 0
      %68 = vst.msk [vmem:[#allocation3 + $0x10] sm:$0xff] %vm61, 0
      %69 = vst.msk [vmem:[#allocation3 + $0x18] sm:$0xff] %vm61, 0
    $region29: #{tpu_custom_call.1} parent=1 // pred_fallthru
      _
    %v70 = vld [vmem:[#allocation6] sm:$0xf]
    %v71 = vld [vmem:[#allocation6 + $0x4] sm:$0xf]
    %v72 = vld [vmem:[#allocation6 + $0x8] sm:$0xf]
    %v73 = vld [vmem:[#allocation6 + $0xc] sm:$0xf]
    %v74 = vld [vmem:[#allocation9] sm:$0xff]
    %v75 = vld [vmem:[#allocation9 + $0x8] sm:$0xff]
    %v76 = vld [vmem:[#allocation9 + $0x10] sm:$0xff]
    %v77 = vld [vmem:[#allocation9 + $0x18] sm:$0xff]
    %v78 = vld [vmem:[#allocation11] sm:$0x3]
    %v80 = vlaneseq
    %v81 = vshrl.u32 %v80, 7
    %v82 = vsub.s32 0, %v81
    %v83 = vrot.slane %v78, %v82
    %v84 = vlaneseq
    %v85 = vshrl.u32 %v84, 7
    %v86 = vsub.s32 1, %v85
    %v87 = vrot.slane %v78, %v86
    %v94 = vunpack.c.l.b16 %v70
    %v95 = vunpack.c.l.b16 %v71
    %v96 = vunpack.c.l.b16 %v72
    %v97 = vunpack.c.l.b16 %v73
    %v98 = vpack.c.b16 %v95, %v94
    %v99 = vpack.c.b16 %v97, %v96
    %v104 = vunpack.c.l.b16 %v74
    %v105 = vunpack.c.h.b16 %v74
    %v106 = vunpack.c.l.b16 %v75
    %v107 = vunpack.c.h.b16 %v75
    %v108 = vunpack.c.l.b16 %v76
    %v109 = vunpack.c.h.b16 %v76
    %v110 = vunpack.c.l.b16 %v77
    %v111 = vunpack.c.h.b16 %v77
    %v112 = vpack.c.b16 %v106, %v104
    %v113 = vpack.c.b16 %v107, %v105
    %v114 = vpack.c.b16 %v110, %v108
    %v115 = vpack.c.b16 %v111, %v109
    %vm120 = vcmask 261120
    %v122 = vsel %vm120, %v98, 0
    %v125 = vsel %vm120, %v99, 0
    %127 = vmatprep.subr.bf16.mxu0 %v113
    %128 = vmatpush1.bf16.msra.mxu0 %v112
    %129 = vmatprep.subr.bf16.mxu0 %v115
    %130 = vmatpush1.bf16.msra.mxu0 %v114
    %131 = vmatprep.subr.bf16.mxu0 0
    %132 = vmatpush1.bf16.msra.mxu0 0
    %133 = vmatprep.subr.bf16.mxu0 0
    %134 = vmatpush1.bf16.msra.mxu0 0
    %135 = vmatprep.subr.bf16.mxu0 0
    %136 = vmatpush1.bf16.msra.mxu0 0
    %137 = vmatprep.subr.bf16.mxu0 0
    %138 = vmatpush1.bf16.msra.mxu0 0
    %139 = vmatprep.subr.bf16.mxu0 0
    %140 = vmatpush1.bf16.msra.mxu0 0
    %141 = vmatprep.subr.bf16.mxu0 0
    %142 = vmatpush1.bf16.msra.mxu0 0
    %143 = vmatprep.subr.bf16.mxu0 0
    %144 = vmatpush1.bf16.msra.mxu0 0
    %145 = vmatprep.subr.bf16.mxu0 0
    %146 = vmatpush1.bf16.msra.mxu0 0
    %147 = vmatprep.subr.bf16.mxu0 0
    %148 = vmatpush1.bf16.msra.mxu0 0
    %149 = vmatprep.subr.bf16.mxu0 0
    %150 = vmatpush1.bf16.msra.mxu0 0
    %151 = vmatprep.subr.bf16.mxu0 0
    %152 = vmatpush1.bf16.msra.mxu0 0
    %153 = vmatprep.subr.bf16.mxu0 0
    %154 = vmatpush1.bf16.msra.mxu0 0
    %155 = vmatprep.subr.bf16.mxu0 0
    %156 = vmatpush1.bf16.msra.mxu0 0
    %157 = vmatprep.subr.bf16.mxu0 0
    %158 = vmatpush1.bf16.msra.mxu0 0
    %159 = vmatprep.mubr.bf16.mxu0 0
    %160 = vmatmul.mubr.bf16.gmra.mrb[0].mxu0 %v122
    %v161 = vpop.f32.mrb[0].mxu0
    %v162 = vadd.f32 %v83, %v161
    %v163 = vpop.f32.mrb[0].mxu0
    %v164 = vadd.f32 %v87, %v163
    %v165 = vpop.f32.mrb[0].mxu0
    %v166 = vadd.f32 %v83, %v165
    %v167 = vpop.f32.mrb[0].mxu0
    %v168 = vadd.f32 %v87, %v167
    %169 = vmatprep.mubr.bf16.mxu0 0
    %170 = vmatmul.mubr.bf16.gmra.mrb[0].mxu0 %v125
    %v171 = vpop.f32.mrb[0].mxu0
    %v172 = vadd.f32 %v83, %v171
    %v173 = vpop.f32.mrb[0].mxu0
    %v174 = vadd.f32 %v87, %v173
    %v175 = vpop.f32.mrb[0].mxu0
    %v176 = vadd.f32 %v83, %v175
    %v177 = vpop.f32.mrb[0].mxu0
    %v178 = vadd.f32 %v87, %v177
    %179 = vdwg.mxu0
    %s180 = smul.u32 0, 256
    %v181 = vlaneseq
    %v182 = vand.u32 %v181, 127
    %v183 = vadd.s32 %v182, 128
    %v184 = vstv %s180
    %v185 = vadd.s32 %v184, %v182
    %v186 = vadd.s32 %v184, %v183
    %s187 = smul.u32 0, 32
    %v188 = vlaneseq
    %v189 = vshrl.u32 %v188, 7
    %v190 = vadd.s32 %v189, 8
    %v191 = vadd.s32 %v189, 16
    %v192 = vadd.s32 %v189, 24
    %v193 = vstv %s187
    %v194 = vadd.s32 %v193, %v189
    %v195 = vadd.s32 %v193, %v190
    %v196 = vadd.s32 %v193, %v191
    %v197 = vadd.s32 %v193, %v192
    %s198 = sld [smem:[#allocation5]]
    %s199 = smul.u32 0, 32
    %v200 = vstv %s199
    %v201 = vadd.s32 %v200, %v194
    %v202 = vadd.s32 %v200, %v195
    %v203 = vadd.s32 %v200, %v196
    %v204 = vadd.s32 %v200, %v197
    %v205 = vmul.u32 %v201, 256
    %v206 = vmul.u32 %v202, 256
    %v207 = vmul.u32 %v203, 256
    %v208 = vmul.u32 %v204, 256
    %v209 = vadd.s32 %v205, %v185
    %v210 = vadd.s32 %v205, %v186
    %v211 = vadd.s32 %v206, %v185
    %v212 = vadd.s32 %v206, %v186
    %v213 = vadd.s32 %v207, %v185
    %v214 = vadd.s32 %v207, %v186
    %v215 = vadd.s32 %v208, %v185
    %v216 = vadd.s32 %v208, %v186
    %s217 = smul.u32 %s198, 2246822507
    %s218 = sor.u32 %s217, 1
    %v219 = vmul.u32 %v209, 2654435769
    %v220 = vmul.u32 %v210, 2654435769
    %v221 = vmul.u32 %v211, 2654435769
    %v222 = vmul.u32 %v212, 2654435769
    %v223 = vmul.u32 %v213, 2654435769
    %v224 = vmul.u32 %v214, 2654435769
    %v225 = vmul.u32 %v215, 2654435769
    %v226 = vmul.u32 %v216, 2654435769
    %v227 = vstv %s218
    %v228 = vadd.s32 %v219, %v227
    %v229 = vadd.s32 %v220, %v227
    %v230 = vadd.s32 %v221, %v227
    %v231 = vadd.s32 %v222, %v227
    %v232 = vadd.s32 %v223, %v227
    %v233 = vadd.s32 %v224, %v227
    %v234 = vadd.s32 %v225, %v227
    %v235 = vadd.s32 %v226, %v227
    %v236 = vshrl.u32 %v228, 16
    %v237 = vshrl.u32 %v229, 16
    %v238 = vshrl.u32 %v230, 16
    %v239 = vshrl.u32 %v231, 16
    %v240 = vshrl.u32 %v232, 16
    %v241 = vshrl.u32 %v233, 16
    %v242 = vshrl.u32 %v234, 16
    %v243 = vshrl.u32 %v235, 16
    %v244 = vxor.u32 %v228, %v236
    %v245 = vxor.u32 %v229, %v237
    %v246 = vxor.u32 %v230, %v238
    %v247 = vxor.u32 %v231, %v239
    %v248 = vxor.u32 %v232, %v240
    %v249 = vxor.u32 %v233, %v241
    %v250 = vxor.u32 %v234, %v242
    %v251 = vxor.u32 %v235, %v243
    %v252 = vmul.u32 %v244, 569420461
    %v253 = vmul.u32 %v245, 569420461
    %v254 = vmul.u32 %v246, 569420461
    %v255 = vmul.u32 %v247, 569420461
    %v256 = vmul.u32 %v248, 569420461
    %v257 = vmul.u32 %v249, 569420461
    %v258 = vmul.u32 %v250, 569420461
    %v259 = vmul.u32 %v251, 569420461
    %v260 = vshrl.u32 %v252, 15
    %v261 = vshrl.u32 %v253, 15
    %v262 = vshrl.u32 %v254, 15
    %v263 = vshrl.u32 %v255, 15
    %v264 = vshrl.u32 %v256, 15
    %v265 = vshrl.u32 %v257, 15
    %v266 = vshrl.u32 %v258, 15
    %v267 = vshrl.u32 %v259, 15
    %v268 = vxor.u32 %v252, %v260
    %v269 = vxor.u32 %v253, %v261
    %v270 = vxor.u32 %v254, %v262
    %v271 = vxor.u32 %v255, %v263
    %v272 = vxor.u32 %v256, %v264
    %v273 = vxor.u32 %v257, %v265
    %v274 = vxor.u32 %v258, %v266
    %v275 = vxor.u32 %v259, %v267
    %v276 = vmul.u32 %v268, 1935289751
    %v277 = vmul.u32 %v269, 1935289751
    %v278 = vmul.u32 %v270, 1935289751
    %v279 = vmul.u32 %v271, 1935289751
    %v280 = vmul.u32 %v272, 1935289751
    %v281 = vmul.u32 %v273, 1935289751
    %v282 = vmul.u32 %v274, 1935289751
    %v283 = vmul.u32 %v275, 1935289751
    %v284 = vshrl.u32 %v276, 15
    %v285 = vshrl.u32 %v277, 15
    %v286 = vshrl.u32 %v278, 15
    %v287 = vshrl.u32 %v279, 15
    %v288 = vshrl.u32 %v280, 15
    %v289 = vshrl.u32 %v281, 15
    %v290 = vshrl.u32 %v282, 15
    %v291 = vshrl.u32 %v283, 15
    %v292 = vxor.u32 %v276, %v284
    %v293 = vxor.u32 %v277, %v285
    %v294 = vxor.u32 %v278, %v286
    %v295 = vxor.u32 %v279, %v287
    %v296 = vxor.u32 %v280, %v288
    %v297 = vxor.u32 %v281, %v289
    %v298 = vxor.u32 %v282, %v290
    %v299 = vxor.u32 %v283, %v291
    %v300 = vshrl.u32 %v292, 8
    %v301 = vshrl.u32 %v293, 8
    %v302 = vshrl.u32 %v294, 8
    %v303 = vshrl.u32 %v295, 8
    %v304 = vshrl.u32 %v296, 8
    %v305 = vshrl.u32 %v297, 8
    %v306 = vshrl.u32 %v298, 8
    %v307 = vshrl.u32 %v299, 8
    %v308 = vcvt.s32.f32 %v300
    %v309 = vcvt.s32.f32 %v301
    %v310 = vcvt.s32.f32 %v302
    %v311 = vcvt.s32.f32 %v303
    %v312 = vcvt.s32.f32 %v304
    %v313 = vcvt.s32.f32 %v305
    %v314 = vcvt.s32.f32 %v306
    %v315 = vcvt.s32.f32 %v307
    %v316 = vadd.f32 %v308, 0.5
    %v317 = vadd.f32 %v309, 0.5
    %v318 = vadd.f32 %v310, 0.5
    %v319 = vadd.f32 %v311, 0.5
    %v320 = vadd.f32 %v312, 0.5
    %v321 = vadd.f32 %v313, 0.5
    %v322 = vadd.f32 %v314, 0.5
    %v323 = vadd.f32 %v315, 0.5
    %v324 = vmul.f32 %v316, 5.9604645e-08
    %v325 = vmul.f32 %v317, 5.9604645e-08
    %v326 = vmul.f32 %v318, 5.9604645e-08
    %v327 = vmul.f32 %v319, 5.9604645e-08
    %v328 = vmul.f32 %v320, 5.9604645e-08
    %v329 = vmul.f32 %v321, 5.9604645e-08
    %v330 = vmul.f32 %v322, 5.9604645e-08
    %v331 = vmul.f32 %v323, 5.9604645e-08
    %v332 = vlog2.pop %v324
    %v333 = vmul.f32 %v332, 0.6931472
    %v334 = vlog2.pop %v325
    %v335 = vmul.f32 %v334, 0.6931472
    %v336 = vlog2.pop %v326
    %v337 = vmul.f32 %v336, 0.6931472
    %v338 = vlog2.pop %v327
    %v339 = vmul.f32 %v338, 0.6931472
    %v340 = vlog2.pop %v328
    %v341 = vmul.f32 %v340, 0.6931472
    %v342 = vlog2.pop %v329
    %v343 = vmul.f32 %v342, 0.6931472
    %v344 = vlog2.pop %v330
    %v345 = vmul.f32 %v344, 0.6931472
    %v346 = vlog2.pop %v331
    %v347 = vmul.f32 %v346, 0.6931472
    %v348 = vsub.f32 0.0, %v333
    %v349 = vsub.f32 0.0, %v335
    %v350 = vsub.f32 0.0, %v337
    %v351 = vsub.f32 0.0, %v339
    %v352 = vsub.f32 0.0, %v341
    %v353 = vsub.f32 0.0, %v343
    %v354 = vsub.f32 0.0, %v345
    %v355 = vsub.f32 0.0, %v347
    %v356 = vlog2.pop %v348
    %v357 = vmul.f32 %v356, 0.6931472
    %v358 = vlog2.pop %v349
    %v359 = vmul.f32 %v358, 0.6931472
    %v360 = vlog2.pop %v350
    %v361 = vmul.f32 %v360, 0.6931472
    %v362 = vlog2.pop %v351
    %v363 = vmul.f32 %v362, 0.6931472
    %v364 = vlog2.pop %v352
    %v365 = vmul.f32 %v364, 0.6931472
    %v366 = vlog2.pop %v353
    %v367 = vmul.f32 %v366, 0.6931472
    %v368 = vlog2.pop %v354
    %v369 = vmul.f32 %v368, 0.6931472
    %v370 = vlog2.pop %v355
    %v371 = vmul.f32 %v370, 0.6931472
    %v372 = vsub.f32 0.0, %v357
    %v373 = vsub.f32 0.0, %v359
    %v374 = vsub.f32 0.0, %v361
    %v375 = vsub.f32 0.0, %v363
    %v376 = vsub.f32 0.0, %v365
    %v377 = vsub.f32 0.0, %v367
    %v378 = vsub.f32 0.0, %v369
    %v379 = vsub.f32 0.0, %v371
    %v380 = vadd.f32 %v162, %v372
    %v381 = vadd.f32 %v164, %v373
    %v382 = vadd.f32 %v166, %v374
    %v383 = vadd.f32 %v168, %v375
    %v384 = vadd.f32 %v172, %v376
    %v385 = vadd.f32 %v174, %v377
    %v386 = vadd.f32 %v176, %v378
    %v387 = vadd.f32 %v178, %v379
    %v388 = vmax.f32 %v380, %v381
    %389 = vmax.xlane.f32.xlu0 %v388
    %v390 = vpop.xlane.xlu0 %389
    %v391 = vmax.f32 %v382, %v383
    %392 = vmax.xlane.f32.xlu0 %v391
    %v393 = vpop.xlane.xlu0 %392
    %v394 = vmax.f32 %v384, %v385
    %395 = vmax.xlane.f32.xlu0 %v394
    %v396 = vpop.xlane.xlu0 %395
    %v397 = vmax.f32 %v386, %v387
    %398 = vmax.xlane.f32.xlu0 %v397
    %v399 = vpop.xlane.xlu0 %398
    %vm400 = vcmp.ge.f32.partialorder %v380, %v390
    %vm401 = vcmp.ge.f32.partialorder %v381, %v390
    %vm402 = vcmp.ge.f32.partialorder %v382, %v393
    %vm403 = vcmp.ge.f32.partialorder %v383, %v393
    %vm404 = vcmp.ge.f32.partialorder %v384, %v396
    %vm405 = vcmp.ge.f32.partialorder %v385, %v396
    %vm406 = vcmp.ge.f32.partialorder %v386, %v399
    %vm407 = vcmp.ge.f32.partialorder %v387, %v399
    %v408 = vsel %vm400, %v185, 2147483647
    %v409 = vsel %vm401, %v186, 2147483647
    %v410 = vsel %vm402, %v185, 2147483647
    %v411 = vsel %vm403, %v186, 2147483647
    %v412 = vsel %vm404, %v185, 2147483647
    %v413 = vsel %vm405, %v186, 2147483647
    %v414 = vsel %vm406, %v185, 2147483647
    %v415 = vsel %vm407, %v186, 2147483647
    %vm416 = vcmp.lt.s32.totalorder %v408, %v409
    %v417 = vsel %vm416, %v408, %v409
    %v418 = vand.u32 %v417, 65535
    %v419 = vshra.s32 %v417, 16
    %v420 = vcvt.s32.f32 %v418
    %v421 = vcvt.s32.f32 %v419
    %422 = vmin.xlane.f32.xlu0 %v421
    %v423 = vpop.xlane.xlu0 %422
    %vm424 = vcmp.eq.f32.partialorder %v421, %v423
    %v425 = vsel %vm424, %v420, inf
    %426 = vmin.xlane.f32.xlu0 %v425
    %v427 = vpop.xlane.xlu0 %426
    %v428 = vcvt.f32.s32 %v427
    %v429 = vcvt.f32.s32 %v423
    %v430 = vshll.u32 %v429, 16
    %v431 = vadd.s32 %v430, %v428
    %vm432 = vcmp.lt.s32.totalorder %v410, %v411
    %v433 = vsel %vm432, %v410, %v411
    %v434 = vand.u32 %v433, 65535
    %v435 = vshra.s32 %v433, 16
    %v436 = vcvt.s32.f32 %v434
    %v437 = vcvt.s32.f32 %v435
    %438 = vmin.xlane.f32.xlu0 %v437
    %v439 = vpop.xlane.xlu0 %438
    %vm440 = vcmp.eq.f32.partialorder %v437, %v439
    %v441 = vsel %vm440, %v436, inf
    %442 = vmin.xlane.f32.xlu0 %v441
    %v443 = vpop.xlane.xlu0 %442
    %v444 = vcvt.f32.s32 %v443
    %v445 = vcvt.f32.s32 %v439
    %v446 = vshll.u32 %v445, 16
    %v447 = vadd.s32 %v446, %v444
    %vm448 = vcmp.lt.s32.totalorder %v412, %v413
    %v449 = vsel %vm448, %v412, %v413
    %v450 = vand.u32 %v449, 65535
    %v451 = vshra.s32 %v449, 16
    %v452 = vcvt.s32.f32 %v450
    %v453 = vcvt.s32.f32 %v451
    %454 = vmin.xlane.f32.xlu0 %v453
    %v455 = vpop.xlane.xlu0 %454
    %vm456 = vcmp.eq.f32.partialorder %v453, %v455
    %v457 = vsel %vm456, %v452, inf
    %458 = vmin.xlane.f32.xlu0 %v457
    %v459 = vpop.xlane.xlu0 %458
    %v460 = vcvt.f32.s32 %v459
    %v461 = vcvt.f32.s32 %v455
    %v462 = vshll.u32 %v461, 16
    %v463 = vadd.s32 %v462, %v460
    %vm464 = vcmp.lt.s32.totalorder %v414, %v415
    %v465 = vsel %vm464, %v414, %v415
    %v466 = vand.u32 %v465, 65535
    %v467 = vshra.s32 %v465, 16
    %v468 = vcvt.s32.f32 %v466
    %v469 = vcvt.s32.f32 %v467
    %470 = vmin.xlane.f32.xlu0 %v469
    %v471 = vpop.xlane.xlu0 %470
    %vm472 = vcmp.eq.f32.partialorder %v469, %v471
    %v473 = vsel %vm472, %v468, inf
    %474 = vmin.xlane.f32.xlu0 %v473
    %v475 = vpop.xlane.xlu0 %474
    %v476 = vcvt.f32.s32 %v475
    %v477 = vcvt.f32.s32 %v471
    %v478 = vshll.u32 %v477, 16
    %v479 = vadd.s32 %v478, %v476
    %v480 = vld [vmem:[#allocation2] sm:$0xff]
    %v481 = vld [vmem:[#allocation2 + $0x8] sm:$0xff]
    %v482 = vld [vmem:[#allocation2 + $0x10] sm:$0xff]
    %v483 = vld [vmem:[#allocation2 + $0x18] sm:$0xff]
    %vm484 = vcmp.gt.f32.partialorder %v390, %v480
    %vm485 = vcmp.gt.f32.partialorder %v393, %v481
    %vm486 = vcmp.gt.f32.partialorder %v396, %v482
    %vm487 = vcmp.gt.f32.partialorder %v399, %v483
    %v488 = vld [vmem:[#allocation3] sm:$0xff]
    %v489 = vld [vmem:[#allocation3 + $0x8] sm:$0xff]
    %v490 = vld [vmem:[#allocation3 + $0x10] sm:$0xff]
    %v491 = vld [vmem:[#allocation3 + $0x18] sm:$0xff]
    %v492 = vsel %vm484, %v431, %v488
    %v493 = vsel %vm485, %v447, %v489
    %v494 = vsel %vm486, %v463, %v490
    %v495 = vsel %vm487, %v479, %v491
    %vm496 = vcmask 7168
    %497 = vst.msk [vmem:[#allocation3] sm:$0xff] %vm496, %v492
    %498 = vst.msk [vmem:[#allocation3 + $0x8] sm:$0xff] %vm496, %v493
    %499 = vst.msk [vmem:[#allocation3 + $0x10] sm:$0xff] %vm496, %v494
    %500 = vst.msk [vmem:[#allocation3 + $0x18] sm:$0xff] %vm496, %v495
    %v501 = vld [vmem:[#allocation2] sm:$0xff]
    %v502 = vld [vmem:[#allocation2 + $0x8] sm:$0xff]
    %v503 = vld [vmem:[#allocation2 + $0x10] sm:$0xff]
    %v504 = vld [vmem:[#allocation2 + $0x18] sm:$0xff]
    %v505 = vmax.f32 %v501, %v390
    %v506 = vmax.f32 %v502, %v393
    %v507 = vmax.f32 %v503, %v396
    %v508 = vmax.f32 %v504, %v399
    %509 = vst.msk [vmem:[#allocation2] sm:$0xff] %vm496, %v505
    %510 = vst.msk [vmem:[#allocation2 + $0x8] sm:$0xff] %vm496, %v506
    %511 = vst.msk [vmem:[#allocation2 + $0x10] sm:$0xff] %vm496, %v507
    %512 = vst.msk [vmem:[#allocation2 + $0x18] sm:$0xff] %vm496, %v508
    // Predicated region
    $region30: #{tpu_custom_call.1} parent=1 // pred_check
      %p513 = pneg %p57
    $region31: #{tpu_custom_call.1} parent=1 // pred_check_branch
      %515 = sbr.rel (%p513) target = $region33
    $region32: #{tpu_custom_call.1} parent=1 // pred_region
      %v516 = vld [vmem:[#allocation3] sm:$0xff]
      %v517 = vld [vmem:[#allocation3 + $0x8] sm:$0xff]
      %v518 = vld [vmem:[#allocation3 + $0x10] sm:$0xff]
      %v519 = vld [vmem:[#allocation3 + $0x18] sm:$0xff]
      %520 = vst.msk [vmem:[#allocation12] sm:$0xff] %vm496, %v516
      %521 = vst.msk [vmem:[#allocation12 + $0x8] sm:$0xff] %vm496, %v517
      %522 = vst.msk [vmem:[#allocation12 + $0x10] sm:$0xff] %vm496, %v518
      %523 = vst.msk [vmem:[#allocation12 + $0x18] sm:$0xff] %vm496, %v519
    $region33: #{tpu_custom_call.1} parent=1 // pred_fallthru
      _
    // Predicated region
    $region34: #{tpu_custom_call.1} parent=1 // pred_check
      _
    $region35: #{tpu_custom_call.1} parent=1 // pred_check_branch
      %525 = sbr.rel (0) target = $region37
    $region36: #{tpu_custom_call.1} parent=1 // pred_region
      %s527 = ssub.s32 512, 512
      %528 = vsyncadd [#allocation8], %s527
      %s529 = sshll.u32 [#allocation12], 4
      %s530 = int_to_ptr.vmem [resolvable:$true] %s529
      %535 = dma.vmem_to_hbm [thread:$0]  %s530, 512, %s4, [#allocation8], 128, 128, 8
    $region37: #{tpu_custom_call.1} parent=1 // pred_fallthru
      _
    // Predicated region
    $region38: #{tpu_custom_call.1} parent=1 // pred_check
      _
    $region39: #{tpu_custom_call.1} parent=1 // pred_check_branch
      %537 = sbr.rel (0) target = $region41
    $region40: #{tpu_custom_call.1} parent=1 // pred_region
      %538 = dma.done [#allocation8], 512
    $region41: #{tpu_custom_call.1} parent=1 // pred_fallthru
      _
    %539 = vsyncpa [#allocation7], 1
    %540 = vsyncpa [#allocation10], 1
    %541 = vsyncpa [#allocation8], 1

</llo_original>
